<compile_context>
chip_gen: v7x
topology: tpu7x:2x2x1
jax: 0.10.0
libtpu: 0.0.40
codegen_flags: <defaults>
</compile_context>

<pallas_src>
import jax
import jax.numpy as jnp
from jax import lax
from jax.experimental import pallas as pl
from jax.experimental.pallas import tpu as pltpu


# ----------------------------- kernel ---------------------------------------

def _make_acf_kernel(HW, tile_hw):
    ragged = (HW % tile_hw) != 0

    def kernel(feat_ref, coarse_ref, w1s_ref, shift_ref, w2_ref, b2_ref,
               out_ref, energy_acc, w2a_ref):
        # feat_ref:   (Cin, T)     x.dtype  HW tile of the feature map (1 batch)
        # coarse_ref: (N,   T)     x.dtype  HW tile of the coarse class map
        # w1s_ref:    (Cout, Cin)  bf16     conv1 weight with BN scale folded in
        # shift_ref:  (Cout, 1)    f32      folded BN shift
        # w2_ref:     (Cout, Cout) bf16     conv2 weight
        # b2_ref:     (Cout, 1)    f32      conv2 bias
        # out_ref:    (Cout, T)    x.dtype  output HW tile
        # energy_acc: (N, Cout)    f32      scratch, accumulated over HW tiles
        # w2a_ref:    (Cout, N)    bf16     scratch, fused w2 @ attention^T
        p = pl.program_id(1)   # phase: 0 = energy accumulation, 1 = apply
        k = pl.program_id(2)   # HW tile index

        @pl.when(p == 0)
        def _accumulate_energy():
            feat = feat_ref[...]
            coarse = coarse_ref[...]
            if ragged:
                # Mask the out-of-bounds lanes of the partial last tile so
                # garbage (possibly NaN) never enters the energy sum.
                col = (lax.broadcasted_iota(jnp.int32, (1, tile_hw), 1)
                       + k * tile_hw)
                valid = col < HW
                feat = jnp.where(valid, feat, 0.0)
                coarse = jnp.where(valid, coarse, 0.0)

            # conv1 (1x1, BN scale folded into w1) + BN shift + ReLU (f32 VPU).
            key = jnp.dot(w1s_ref[...], feat.astype(jnp.bfloat16),
                          preferred_element_type=jnp.float32)        # (Cout, T)
            key = jnp.maximum(key + shift_ref[...], 0.0).astype(jnp.bfloat16)

            # Partial energy: coarse_tile (N,T) . key^T (T,Cout) -> (N, Cout).
            e_part = lax.dot_general(coarse.astype(jnp.bfloat16), key,
                                     (((1,), (1,)), ((), ())),
                                     preferred_element_type=jnp.float32)

            @pl.when(k == 0)
            def _():
                energy_acc[...] = e_part

            @pl.when(k > 0)
            def _():
                energy_acc[...] += e_part

        @pl.when(p == 1)
        def _apply_attention():
            @pl.when(k == 0)
            def _():
                energy = energy_acc[...]                              # (N, Cout)
                # softmax(rowmax(E)-E) == exp(rowmin(E)-E) / sum(exp(rowmin(E)-E))
                e_exp = jnp.exp(jnp.min(energy, axis=-1, keepdims=True) - energy)
                attn = e_exp * pl.reciprocal(
                    jnp.sum(e_exp, axis=-1, keepdims=True), approx=True)
                # fused conv2: w2 @ attention^T -> (Cout, N)
                w2a = lax.dot_general(w2_ref[...], attn.astype(jnp.bfloat16),
                                      (((1,), (1,)), ((), ())),
                                      preferred_element_type=jnp.float32)
                w2a_ref[...] = w2a.astype(jnp.bfloat16)

            # out_tile = (w2 @ attention^T) @ coarse_tile + b2
            # TODO(synk): for tiny Cout/N (<<128) this K=N MXU dot could be a
            # VPU broadcast-FMA; at real model sizes (Cout=512) MXU is right.
            out = jnp.dot(w2a_ref[...], coarse_ref[...].astype(jnp.bfloat16),
                          preferred_element_type=jnp.float32)         # (Cout, T)
            out_ref[...] = (out + b2_ref[...]).astype(out_ref.dtype)

    return kernel


# ----------------------------- wrapper ---------------------------------------

def _vmem_budget_bytes():
    # ~15% headroom below physical per-core VMEM (64 MiB v7x, 128 MiB v5e/v6e).
    try:
        cap = int(pltpu.get_tpu_info().vmem_capacity_bytes)
    except Exception:
        cap = 0
    if cap <= 0:
        cap = 64 * 1024 * 1024          # conservative: smallest (v7x) VMEM
    return int(cap * 0.85)


def _pick_tile_hw(Cin, N, Cout, HW, out_itemsize, vmem_budget, tile_hw=None):
    """Largest 128-aligned HW tile whose double-buffered blocks fit the budget."""
    per_col = 2 * (Cin * 4 + N * 4 + Cout * out_itemsize)   # f32 feat/coarse + out
    fixed = (2 * 2 * (Cout * Cin + Cout * Cout)             # bf16 weights (2 bufs)
             + 4 * 2 * 2 * Cout                             # shift / b2
             + 4 * N * Cout + 2 * Cout * N                  # scratch accumulators
             + (2 << 20))                                    # compiler slack
    avail = max(vmem_budget - fixed, per_col * 128)
    max_tile = max(128, min(avail // per_col, 8192))
    max_tile = (max_tile // 128) * 128
    if tile_hw is not None:
        max_tile = min(max_tile, max(128, (int(tile_hw) // 128) * 128))
    if HW <= max_tile:
        return int(HW)      # single full-width tile (full dim: no ragged edge)
    return int(max_tile)


def acf_module_forward(x, coarse_x, params, *, tile_hw=None):
    """x: (B, Cin, H, W), coarse_x: (B, N, H, W) -> (B, Cout, H, W) in x.dtype."""
    B, Cin, H, W = x.shape
    Bc, N, Hc, Wc = coarse_x.shape
    assert B == Bc and (H, W) == (Hc, Wc)
    Cout = params["w1_scaled"].shape[0]
    HW = H * W

    # No casts / pads of the big feat operand in the wrapper -- reshape only.
    feat = x.reshape(B, Cin, HW)
    coarse = coarse_x.reshape(B, N, HW)

    w1s = params.get("w1_scaled_bf16", params["w1_scaled"]).astype(jnp.bfloat16)
    w2 = params.get("w2_bf16", params["w2"]).astype(jnp.bfloat16)
    shift = params["bn_shift"].astype(jnp.float32)
    b2 = params["b2"].astype(jnp.float32)

    out_dtype = x.dtype
    budget = _vmem_budget_bytes()
    t = _pick_tile_hw(Cin, N, Cout, HW, jnp.dtype(out_dtype).itemsize,
                      budget, tile_hw)
    n_hw = pl.cdiv(HW, t)

    kernel = _make_acf_kernel(HW, t)

    out_flat = pl.pallas_call(
        kernel,
        out_shape=jax.ShapeDtypeStruct((B, Cout, HW), out_dtype),
        grid=(B, 2, n_hw),
        in_specs=[
            # feat: tiled over HW in phase 0; phase 1 pins the last block so
            # the dominant operand is streamed from HBM exactly once per batch.
            pl.BlockSpec((None, Cin, t),
                         lambda b, p, k: (b, 0, k * (1 - p) + (n_hw - 1) * p)),
            # coarse: small (N rows) -- streamed once per phase.
            pl.BlockSpec((None, N, t), lambda b, p, k: (b, 0, k)),
            pl.BlockSpec((Cout, Cin), lambda b, p, k: (0, 0)),
            pl.BlockSpec((Cout, 1), lambda b, p, k: (0, 0)),
            pl.BlockSpec((Cout, Cout), lambda b, p, k: (0, 0)),
            pl.BlockSpec((Cout, 1), lambda b, p, k: (0, 0)),
        ],
        # All of phase 0 maps onto block 0, so each output block is written
        # back exactly once (right after its phase-1 tile has been computed).
        out_specs=pl.BlockSpec((None, Cout, t), lambda b, p, k: (b, 0, k * p)),
        scratch_shapes=[pltpu.VMEM((N, Cout), jnp.float32),
                        pltpu.VMEM((Cout, N), jnp.bfloat16)],
        compiler_params=pltpu.CompilerParams(
            # TODO(synk): with B == 1 on v7x one TensorCore idles; splitting
            # the energy accumulation across cores would need core_map.
            dimension_semantics=("parallel", "arbitrary", "arbitrary"),
            vmem_limit_bytes=budget,
        ),
    )(feat, coarse, w1s, shift, w2, b2)

    return out_flat.reshape(B, Cout, H, W)


# ----------------------------- references -----------------------------------

def _reference_forward_f32(x, coarse_x, params):
    """Pure-f32 JAX reference matching the PyTorch forward (eval mode)."""
    B, Cin, H, W = x.shape
    _, N, _, _ = coarse_x.shape
    Cout = params["w1"].shape[0]
    HW = H * W
    feat = x.reshape(B, Cin, HW).astype(jnp.float32)
    coarse = coarse_x.reshape(B, N, HW).astype(jnp.float32)

    key = jnp.einsum("oc,bcs->bos", params["w1"], feat)
    key = jnp.maximum(key * params["bn_scale"][None] + params["bn_shift"][None], 0.0)

    energy = jnp.einsum("bns,bcs->bnc", coarse, key)               # (B, N, Cout)
    energy_new = jnp.max(energy, axis=-1, keepdims=True) - energy
    attention = jax.nn.softmax(energy_new, axis=-1)                # (B, N, Cout)
    out = jnp.einsum("bnc,bns->bcs", attention, coarse)            # (B, Cout, HW)
    out = jnp.einsum("oc,bcs->bos", params["w2"], out) + params["b2"][None]
    return out.reshape(B, Cout, H, W)


def _reference_forward_mixed(x, coarse_x, params):
    """Mirror of the kernel's mixed precision (bf16 MXU operands, f32 accum)."""
    B, Cin, H, W = x.shape
    _, N, _, _ = coarse_x.shape
    Cout = params["w1_scaled"].shape[0]
    HW = H * W
    feat = x.reshape(B, Cin, HW).astype(jnp.bfloat16)
    coarse = coarse_x.reshape(B, N, HW).astype(jnp.bfloat16)
    w1s = params["w1_scaled"].astype(jnp.bfloat16)

    key = jnp.einsum("oc,bcs->bos", w1s, feat,
                     preferred_element_type=jnp.float32)
    key = jnp.maximum(key + params["bn_shift"][None], 0.0).astype(jnp.bfloat16)

    energy = jnp.einsum("bns,bos->bno", coarse, key,
                        preferred_element_type=jnp.float32)        # (B, N, Cout)
    e_exp = jnp.exp(jnp.min(energy, axis=-1, keepdims=True) - energy)
    attention = (e_exp / jnp.sum(e_exp, axis=-1, keepdims=True)).astype(jnp.bfloat16)

    w2a = jnp.einsum("oc,bnc->bon", params["w2"].astype(jnp.bfloat16), attention,
                     preferred_element_type=jnp.float32).astype(jnp.bfloat16)
    out = jnp.einsum("bon,bns->bos", w2a, coarse,
                     preferred_element_type=jnp.float32)
    out = out + params["b2"][None]
    return out.reshape(B, Cout, H, W)


def make_params(key, in_channels, out_channels, dtype=jnp.float32):
    k1, k2, k3, k4 = jax.random.split(key, 4)
    w1 = (jax.random.normal(k1, (out_channels, in_channels), dtype)
          * (1.0 / jnp.sqrt(in_channels)))
    # BatchNorm2d folded at inference: scale = gamma/sqrt(var+eps),
    # shift = beta - mean*scale.
    gamma = 1.0 + 0.1 * jax.random.normal(k2, (out_channels,), dtype)
    beta = 0.05 * jax.random.normal(k3, (out_channels,), dtype)
    running_mean = jnp.zeros((out_channels,), dtype)
    running_var = jnp.ones((out_channels,), dtype)
    eps = 1e-5
    scale = (gamma / jnp.sqrt(running_var + eps)).reshape(out_channels, 1)
    shift = beta.reshape(out_channels, 1) - running_mean.reshape(out_channels, 1) * scale
    # conv2: kaiming_normal_(a=1) -> std = sqrt(1 / fan_in), bias = 0
    w2 = (jax.random.normal(k4, (out_channels, out_channels), dtype)
          * jnp.sqrt(1.0 / out_channels))
    b2 = jnp.zeros((out_channels, 1), dtype)
    w1_scaled = scale * w1
    return {
        "w1": w1,
        "bn_scale": scale,
        "bn_shift": shift,
        "w1_scaled": w1_scaled,                           # BN scale folded into conv1
        "w1_scaled_bf16": w1_scaled.astype(jnp.bfloat16),  # host-side cast, once
        "w2": w2,
        "w2_bf16": w2.astype(jnp.bfloat16),
        "b2": b2,
    }


if __name__ == "__main__":
    # TODO(synk): only the acf_Module (ACFModule) attention head is implemented
    # as a Pallas kernel; the ResNet backbone / ASPP / FCNHead / dsn /
    # bottleneck convolutions are standard convs and are out of scope here.
    B, Cin, Cout, N = 2, 16, 8, 8
    root = jax.random.PRNGKey(0)
    params = make_params(jax.random.fold_in(root, 7), Cin, Cout)

    configs = (
        (16, 16, 128),   # multi-tile energy accumulation + tiled phase-1 sweep
        (12, 12, 128),   # ragged last HW tile, masked in-kernel
        (10, 10, None),  # HW < 128 -> single full-width tile
    )
    for cfg_i, (H, W, tile_hw) in enumerate(configs):
        kx, kc = jax.random.split(jax.random.fold_in(root, cfg_i), 2)
        x = jax.random.normal(kx, (B, Cin, H, W), jnp.float32)       # feat_ffm
        coarse_x = jax.random.normal(kc, (B, N, H, W), jnp.float32)  # coarse maps

        out = acf_module_forward(x, coarse_x, params, tile_hw=tile_hw)
        out = jax.block_until_ready(out)
        assert out.shape == (B, Cout, H, W)
        assert out.dtype == x.dtype

        # tight check against a reference using the same mixed precision
        ref_mixed = _reference_forward_mixed(x, coarse_x, params)
        assert jnp.allclose(out, ref_mixed, atol=3e-2, rtol=3e-2), (
            f"cfg {cfg_i}: mismatch vs mixed-precision reference")

        # loose sanity check vs the exact PyTorch-semantics f32 reference
        # (bf16 MXU operands shift results at the ~1e-2 relative level)
        ref_f32 = _reference_forward_f32(x, coarse_x, params)
        assert jnp.allclose(out, ref_f32, atol=0.3, rtol=0.05), (
            f"cfg {cfg_i}: mismatch vs f32 reference")

    print("KERNEL_OK")
</pallas_src>

<mosaic_0001>
module attributes {stable_mosaic.version = 11 : i64} {
  func.func @kernel(%arg0: i32, %arg1: i32, %arg2: i32, %arg3: memref<1x16x128xf32, #tpu.memory_space<vmem>>, %arg4: memref<1x8x128xf32, #tpu.memory_space<vmem>>, %arg5: memref<8x16xbf16, #tpu.memory_space<vmem>>, %arg6: memref<8x1xf32, #tpu.memory_space<vmem>>, %arg7: memref<8x8xbf16, #tpu.memory_space<vmem>>, %arg8: memref<8x1xf32, #tpu.memory_space<vmem>>, %arg9: memref<1x8x128xf32, #tpu.memory_space<vmem>>, %arg10: memref<8x8xf32, #tpu.memory_space<vmem>>, %arg11: memref<8x8xbf16, #tpu.memory_space<vmem>>) attributes {dimension_semantics = [#tpu.dimension_semantics<parallel>, #tpu.dimension_semantics<arbitrary>, #tpu.dimension_semantics<arbitrary>], iteration_bounds = array<i64: 2, 2, 2>, scalar_prefetch = 0 : i64, scratch_operands = 2 : i64, tpu.core_type = #tpu.core_type<tc>, window_params = [{transform_indices = @transform_0, window_bounds = array<i64: 1, 16, 128>}, {transform_indices = @transform_1, window_bounds = array<i64: 1, 8, 128>}, {pipeline_mode = #tpu.pipeline_mode<synchronous>, transform_indices = @transform_2, window_bounds = array<i64: 8, 16>}, {pipeline_mode = #tpu.pipeline_mode<synchronous>, transform_indices = @transform_3, window_bounds = array<i64: 8, 1>}, {pipeline_mode = #tpu.pipeline_mode<synchronous>, transform_indices = @transform_4, window_bounds = array<i64: 8, 8>}, {pipeline_mode = #tpu.pipeline_mode<synchronous>, transform_indices = @transform_5, window_bounds = array<i64: 8, 1>}, {transform_indices = @transform_6, window_bounds = array<i64: 1, 8, 128>}]} {
    %c0_i32 = arith.constant 0 : i32
    %0 = arith.cmpi eq, %arg1, %c0_i32 : i32
    %1 = arith.extui %0 : i1 to i32
    %c0_i32_0 = arith.constant 0 : i32
    %2 = arith.cmpi ne, %1, %c0_i32_0 : i32
    scf.if %2 {
      %c0 = arith.constant 0 : index
      %c0_2 = arith.constant 0 : index
      %c0_3 = arith.constant 0 : index
      %6 = vector.load %arg3[%c0, %c0_2, %c0_3] : memref<1x16x128xf32, #tpu.memory_space<vmem>>, vector<1x16x128xf32>
      %7 = vector.shape_cast %6 : vector<1x16x128xf32> to vector<16x128xf32>
      %c0_4 = arith.constant 0 : index
      %c0_5 = arith.constant 0 : index
      %c0_6 = arith.constant 0 : index
      %8 = vector.load %arg4[%c0_4, %c0_5, %c0_6] : memref<1x8x128xf32, #tpu.memory_space<vmem>>, vector<1x8x128xf32>
      %9 = vector.shape_cast %8 : vector<1x8x128xf32> to vector<8x128xf32>
      %c0_7 = arith.constant 0 : index
      %c0_8 = arith.constant 0 : index
      %10 = vector.load %arg5[%c0_7, %c0_8] : memref<8x16xbf16, #tpu.memory_space<vmem>>, vector<8x16xbf16>
      %11 = arith.truncf %7 : vector<16x128xf32> to vector<16x128xbf16>
      %cst = arith.constant dense<0.000000e+00> : vector<8x128xf32>
      %12 = tpu.matmul %10, %11, %cst {dimension_numbers = #tpu.dot_dimension_numbers<[1], [0], [0], [1], [0, 0, 1, 1], [], []>} : vector<8x16xbf16>, vector<16x128xbf16>, vector<8x128xf32> -> vector<8x128xf32>
      %c0_9 = arith.constant 0 : index
      %c0_10 = arith.constant 0 : index
      %13 = vector.load %arg6[%c0_9, %c0_10] : memref<8x1xf32, #tpu.memory_space<vmem>>, vector<8x1xf32>
      %14 = vector.broadcast %13 : vector<8x1xf32> to vector<8x128xf32>
      %15 = arith.addf %12, %14 : vector<8x128xf32>
      %cst_11 = arith.constant 0.000000e+00 : f32
      %16 = vector.broadcast %cst_11 : f32 to vector<8x128xf32>
      %17 = arith.maximumf %15, %16 : vector<8x128xf32>
      %18 = arith.truncf %17 : vector<8x128xf32> to vector<8x128xbf16>
      %19 = arith.truncf %9 : vector<8x128xf32> to vector<8x128xbf16>
      %cst_12 = arith.constant dense<0.000000e+00> : vector<8x8xf32>
      %20 = tpu.matmul %19, %18, %cst_12 {dimension_numbers = #tpu.dot_dimension_numbers<[1], [1], [0], [0], [0, 0, 1, 0], [], []>} : vector<8x128xbf16>, vector<8x128xbf16>, vector<8x8xf32> -> vector<8x8xf32>
      %c0_i32_13 = arith.constant 0 : i32
      %21 = arith.cmpi eq, %arg2, %c0_i32_13 : i32
      %22 = arith.extui %21 : i1 to i32
      %c0_i32_14 = arith.constant 0 : i32
      %23 = arith.cmpi ne, %22, %c0_i32_14 : i32
      scf.if %23 {
        %c0_17 = arith.constant 0 : index
        %c0_18 = arith.constant 0 : index
        %27 = vector.load %arg10[%c0_17, %c0_18] : memref<8x8xf32, #tpu.memory_space<vmem>>, vector<8x8xf32>
        tpu.vector_store %arg10[%c0_17, %c0_18], %20 {strides = array<i32>} : memref<8x8xf32, #tpu.memory_space<vmem>>, vector<8x8xf32>,
      } else {
      }
      %c0_i32_15 = arith.constant 0 : i32
      %24 = arith.cmpi sgt, %arg2, %c0_i32_15 : i32
      %25 = arith.extui %24 : i1 to i32
      %c0_i32_16 = arith.constant 0 : i32
      %26 = arith.cmpi ne, %25, %c0_i32_16 : i32
      scf.if %26 {
        %c0_17 = arith.constant 0 : index
        %c0_18 = arith.constant 0 : index
        %27 = vector.load %arg10[%c0_17, %c0_18] : memref<8x8xf32, #tpu.memory_space<vmem>>, vector<8x8xf32>
        %28 = arith.addf %27, %20 : vector<8x8xf32>
        %c0_19 = arith.constant 0 : index
        %c0_20 = arith.constant 0 : index
        %29 = vector.load %arg10[%c0_19, %c0_20] : memref<8x8xf32, #tpu.memory_space<vmem>>, vector<8x8xf32>
        tpu.vector_store %arg10[%c0_19, %c0_20], %28 {strides = array<i32>} : memref<8x8xf32, #tpu.memory_space<vmem>>, vector<8x8xf32>,
      } else {
      }
    } else {
    }
    %c1_i32 = arith.constant 1 : i32
    %3 = arith.cmpi eq, %arg1, %c1_i32 : i32
    %4 = arith.extui %3 : i1 to i32
    %c0_i32_1 = arith.constant 0 : i32
    %5 = arith.cmpi ne, %4, %c0_i32_1 : i32
    scf.if %5 {
      %c0_i32_2 = arith.constant 0 : i32
      %6 = arith.cmpi eq, %arg2, %c0_i32_2 : i32
      %7 = arith.extui %6 : i1 to i32
      %c0_i32_3 = arith.constant 0 : i32
      %8 = arith.cmpi ne, %7, %c0_i32_3 : i32
      scf.if %8 {
        %c0_13 = arith.constant 0 : index
        %c0_14 = arith.constant 0 : index
        %20 = vector.load %arg10[%c0_13, %c0_14] : memref<8x8xf32, #tpu.memory_space<vmem>>, vector<8x8xf32>
        %cst_15 = arith.constant dense<0x7F800000> : vector<8xf32>
        %21 = vector.multi_reduction <minimumf>, %20, %cst_15 [1] : vector<8x8xf32> to vector<8xf32>
        %22 = vector.shape_cast %21 : vector<8xf32> to vector<8x1xf32>
        %23 = vector.broadcast %22 : vector<8x1xf32> to vector<8x8xf32>
        %24 = arith.subf %23, %20 : vector<8x8xf32>
        %25 = math.exp %24 : vector<8x8xf32>
        %cst_16 = arith.constant dense<0.000000e+00> : vector<8xf32>
        %26 = vector.multi_reduction <add>, %25, %cst_16 [1] : vector<8x8xf32> to vector<8xf32>
        %27 = vector.shape_cast %26 : vector<8xf32> to vector<8x1xf32>
        %28 = tpu.reciprocal %27 {approx = true} : vector<8x1xf32> -> vector<8x1xf32>
        %29 = vector.broadcast %28 : vector<8x1xf32> to vector<8x8xf32>
        %30 = arith.mulf %25, %29 : vector<8x8xf32>
        %c0_17 = arith.constant 0 : index
        %c0_18 = arith.constant 0 : index
        %31 = vector.load %arg7[%c0_17, %c0_18] : memref<8x8xbf16, #tpu.memory_space<vmem>>, vector<8x8xbf16>
        %32 = arith.truncf %30 : vector<8x8xf32> to vector<8x8xbf16>
        %cst_19 = arith.constant dense<0.000000e+00> : vector<8x8xf32>
        %33 = tpu.matmul %31, %32, %cst_19 {dimension_numbers = #tpu.dot_dimension_numbers<[1], [1], [0], [0], [0, 0, 1, 0], [], []>} : vector<8x8xbf16>, vector<8x8xbf16>, vector<8x8xf32> -> vector<8x8xf32>
        %34 = arith.truncf %33 : vector<8x8xf32> to vector<8x8xbf16>
        %c0_20 = arith.constant 0 : index
        %c0_21 = arith.constant 0 : index
        %35 = vector.load %arg11[%c0_20, %c0_21] : memref<8x8xbf16, #tpu.memory_space<vmem>>, vector<8x8xbf16>
        tpu.vector_store %arg11[%c0_20, %c0_21], %34 {strides = array<i32>} : memref<8x8xbf16, #tpu.memory_space<vmem>>, vector<8x8xbf16>,
      } else {
      }
      %c0 = arith.constant 0 : index
      %c0_4 = arith.constant 0 : index
      %9 = vector.load %arg11[%c0, %c0_4] : memref<8x8xbf16, #tpu.memory_space<vmem>>, vector<8x8xbf16>
      %c0_5 = arith.constant 0 : index
      %c0_6 = arith.constant 0 : index
      %c0_7 = arith.constant 0 : index
      %10 = vector.load %arg4[%c0_5, %c0_6, %c0_7] : memref<1x8x128xf32, #tpu.memory_space<vmem>>, vector<1x8x128xf32>
      %11 = vector.shape_cast %10 : vector<1x8x128xf32> to vector<8x128xf32>
      %12 = arith.truncf %11 : vector<8x128xf32> to vector<8x128xbf16>
      %cst = arith.constant dense<0.000000e+00> : vector<8x128xf32>
      %13 = tpu.matmul %9, %12, %cst {dimension_numbers = #tpu.dot_dimension_numbers<[1], [0], [0], [1], [0, 0, 1, 1], [], []>} : vector<8x8xbf16>, vector<8x128xbf16>, vector<8x128xf32> -> vector<8x128xf32>
      %c0_8 = arith.constant 0 : index
      %c0_9 = arith.constant 0 : index
      %14 = vector.load %arg8[%c0_8, %c0_9] : memref<8x1xf32, #tpu.memory_space<vmem>>, vector<8x1xf32>
      %15 = vector.broadcast %14 : vector<8x1xf32> to vector<8x128xf32>
      %16 = arith.addf %13, %15 : vector<8x128xf32>
      %c0_10 = arith.constant 0 : index
      %c0_11 = arith.constant 0 : index
      %c0_12 = arith.constant 0 : index
      %17 = vector.load %arg9[%c0_10, %c0_11, %c0_12] : memref<1x8x128xf32, #tpu.memory_space<vmem>>, vector<1x8x128xf32>
      %18 = vector.shape_cast %17 : vector<1x8x128xf32> to vector<8x128xf32>
      %19 = vector.shape_cast %16 : vector<8x128xf32> to vector<1x8x128xf32>
      tpu.vector_store %arg9[%c0_10, %c0_11, %c0_12], %19 {strides = array<i32>} : memref<1x8x128xf32, #tpu.memory_space<vmem>>, vector<1x8x128xf32>,
    } else {
    }
    return
  }
  func.func @transform_0(%arg0: i32, %arg1: i32, %arg2: i32) -> (i32, i32, i32) {
    %c1_i32 = arith.constant 1 : i32
    %0 = arith.subi %c1_i32, %arg1 : i32
    %1 = arith.muli %arg2, %0 : i32
    %c1_i32_0 = arith.constant 1 : i32
    %2 = arith.muli %c1_i32_0, %arg1 : i32
    %3 = arith.addi %1, %2 : i32
    %c0_i32 = arith.constant 0 : i32
    %c0_i32_1 = arith.constant 0 : i32
    return %arg0, %c0_i32, %3 : i32, i32, i32
  }
  func.func @transform_1(%arg0: i32, %arg1: i32, %arg2: i32) -> (i32, i32, i32) {
    %c0_i32 = arith.constant 0 : i32
    %c0_i32_0 = arith.constant 0 : i32
    return %arg0, %c0_i32, %arg2 : i32, i32, i32
  }
  func.func @transform_2(%arg0: i32, %arg1: i32, %arg2: i32) -> (i32, i32) {
    %c0_i32 = arith.constant 0 : i32
    %c0_i32_0 = arith.constant 0 : i32
    %c0_i32_1 = arith.constant 0 : i32
    return %c0_i32, %c0_i32_0 : i32, i32
  }
  func.func @transform_3(%arg0: i32, %arg1: i32, %arg2: i32) -> (i32, i32) {
    %c0_i32 = arith.constant 0 : i32
    %c0_i32_0 = arith.constant 0 : i32
    %c0_i32_1 = arith.constant 0 : i32
    return %c0_i32, %c0_i32_0 : i32, i32
  }
  func.func @transform_4(%arg0: i32, %arg1: i32, %arg2: i32) -> (i32, i32) {
    %c0_i32 = arith.constant 0 : i32
    %c0_i32_0 = arith.constant 0 : i32
    %c0_i32_1 = arith.constant 0 : i32
    return %c0_i32, %c0_i32_0 : i32, i32
  }
  func.func @transform_5(%arg0: i32, %arg1: i32, %arg2: i32) -> (i32, i32) {
    %c0_i32 = arith.constant 0 : i32
    %c0_i32_0 = arith.constant 0 : i32
    %c0_i32_1 = arith.constant 0 : i32
    return %c0_i32, %c0_i32_0 : i32, i32
  }
  func.func @transform_6(%arg0: i32, %arg1: i32, %arg2: i32) -> (i32, i32, i32) {
    %0 = arith.muli %arg2, %arg1 : i32
    %c0_i32 = arith.constant 0 : i32
    %c0_i32_0 = arith.constant 0 : i32
    return %arg0, %c0_i32, %0 : i32, i32, i32
  }
}

</mosaic_0001>

<llo_original>
// kernel: tpu_custom_call.1
$region0: #{tpu_custom_call.1}
  #allocation0 [shape = 'u32[]', space=smem, size = 0x4, offset = 0x4, fixed_abs, tag = 'smem constant byte address 0x4 - core index']
  #allocation1 [shape = 'u32[144,128]{1,0:T(1,128)}', space=vmem, size = 0x12000, scoped, tag = 'internal scratch']
  #allocation2 [shape = 'f32[8,8]{1,0:T(8,128)}', space=vmem, size = 0x1000, scoped, tag = 'scratch operand']
  #allocation3 [shape = 'bf16[8,8]{1,0:T(8,128)(2,1)}', space=vmem, size = 0x800, scoped, tag = 'scratch operand']
  %s0 = inlined_call_operand.hbm [shape: f32[2,16,256], index: 0, kind: input, shape index: {}]
  %s1 = inlined_call_operand.hbm [shape: f32[2,8,256], index: 1, kind: input, shape index: {}]
  %s2 = inlined_call_operand.vmem [shape: bf16[8,16], index: 2, kind: input, shape index: {}]
  %s3 = inlined_call_operand.vmem [shape: f32[8,1], index: 3, kind: input, shape index: {}]
  %s4 = inlined_call_operand.vmem [shape: bf16[8,8], index: 4, kind: input, shape index: {}]
  %s5 = inlined_call_operand.vmem [shape: f32[8,1], index: 5, kind: input, shape index: {}]
  %s6 = inlined_call_operand.hbm [shape: f32[2,8,256], index: 6, kind: output, shape index: {}]
  %s7 = sld [smem:[#allocation0]]
  $region85: #{tpu_custom_call.1} parent=0
    _
  %s9 = ssub.s32 1, %s7
  %s10 = scalar_select 0, %s9, %s7
  $region1: #{tpu_custom_call.1} parent=0
    #allocation4 [shape = 'u8[16384]{0}', space=vmem, size = 0x4000, scoped, tag = 'input window, operand 0']
    #allocation5 [shape = 's32[2]{0}', space=sflag, size = 0x8, scoped, tag = 'scoped memory for tpu_custom_call.1']
    #allocation6 [shape = 's32[2]{0}', space=sflag, size = 0x8, scoped, tag = 'scoped memory for tpu_custom_call.1']
    #allocation7 [shape = 'u8[8192]{0}', space=vmem, size = 0x2000, scoped, tag = 'input window, operand 1']
    #allocation8 [shape = 's32[2]{0}', space=sflag, size = 0x8, scoped, tag = 'scoped memory for tpu_custom_call.1']
    #allocation9 [shape = 'u8[8192]{0}', space=vmem, size = 0x2000, scoped, tag = 'output window, operand 0']
    %11 = vsyncpa [#allocation5], 0
    %s12 = scalar_lea.sflag [#allocation5], 1
    %13 = vsyncpa %s12, 0
    %14 = vsyncpa [#allocation8], 0
    %s15 = scalar_lea.sflag [#allocation8], 1
    %16 = vsyncpa %s15, 0
    %17 = vsyncpa [#allocation6], 0
    %s18 = scalar_lea.sflag [#allocation6], 1
    %19 = vsyncpa %s18, 0
    loop: start=0, step=1, limit=10
    $region2: #{tpu_custom_call.1} parent=1 // loop_pre_header
      _
    $region3: #{tpu_custom_call.1} parent=1 // loop_header
      %s21 = sphi 0, %s25
      %p22 = scmp.ge.s32.totalorder %s21, 10
      %s28 = sphi 0, %s47
      %s29 = sphi 0, %s43
      %s30 = sphi 0, %s39
      %s31 = sphi 0, %s28
      %s32 = sphi 0, %s29
      %s33 = sphi 0, %s30
      %s34 = sphi 0, %s31
      %s35 = sphi 0, %s32
      %s36 = sphi 0, %s33
      %s58 = sphi 0, %s60
      %s61 = sphi 0, %s58
      %s62 = sphi 0, %s61
      %s78 = sphi 0, %s62
      %s86 = sphi 0, %s88
      %s89 = sphi 0, %s86
      %s90 = sphi 0, %s89
      %s106 = sphi 0, %s90
      %s110 = sphi 0, %s110
      %s112 = sphi 0, %s110
      %s113 = sphi 0, %s112
      %s127 = sphi 0, %s113
      %s131 = sphi 0, %s131
      %s133 = sphi 0, %s131
      %s134 = sphi 0, %s133
      %s148 = sphi 0, %s134
      %s152 = sphi 0, %s152
      %s154 = sphi 0, %s152
      %s155 = sphi 0, %s154
      %s169 = sphi 0, %s155
      %s173 = sphi 0, %s173
      %s175 = sphi 0, %s173
      %s176 = sphi 0, %s175
      %s190 = sphi 0, %s176
      %s200 = sphi 0, %s202
      %s203 = sphi 0, %s200
      %s204 = sphi 0, %s203
      %s220 = sphi 0, %s204
    $region4: #{tpu_custom_call.1} parent=1 // loop_header_branch
      %24 = sbr.rel (%p22) target = $region8
    $region5: #{tpu_custom_call.1} parent=1 // loop_body
      %s26 = ssub.s32 %s21, 1
      %s27 = ssub.s32 %s21, 2
      %s37 = sadd.s32 1, %s30
      %p38 = scmp.ge.s32.totalorder %s37, 2
      %s39 = scalar_select %p38, 0, %s37
      %s40 = sadd.s32 1, %s29
      %s41 = scalar_select %p38, %s40, %s29
      %p42 = scmp.ge.s32.totalorder %s41, 2
      %s43 = scalar_select %p42, 0, %s41
      %s44 = sadd.s32 1, %s28
      %s45 = scalar_select %p42, %s44, %s28
      %p46 = scmp.ge.s32.totalorder %s45, 2
      %s47 = scalar_select %p46, 0, %s45
      %s48 = ssub.s32 1, %s29
      %s49 = smul.u32 %s30, %s48
      %s50 = sadd.s32 %s49, %s29
      %s51 = ssub.s32 1, %s43
      %s52 = smul.u32 %s39, %s51
      %s53 = sadd.s32 %s52, %s43
      %s54 = ssub.s32 %s28, %s47
      %s55 = ssub.s32 %s50, %s53
      %s56 = sor.u32 %s54, %s55
      %p57 = scmp.eq.s32.totalorder %s56, 0
      %s59 = sadd.s32 %s58, 1
      %s60 = scalar_select %p57, %s58, %s59
      %p63 = pneg %p57
      %p64 = scmp.eq.s32.totalorder %s21, 7
      %p65 = por %p63, %p64
      %p66 = scmp.ne.s32.totalorder %s58, %s61
      %p67 = scmp.eq.s32.totalorder %s21, 0
      %p68 = por %p66, %p67
      %p69 = scmp.ne.s32.totalorder %s58, %s61
      %p70 = scmp.eq.s32.totalorder %s26, 7
      %p71 = por %p69, %p70
      %p72 = scmp.ne.s32.totalorder %s61, %s62
      %p73 = scmp.eq.s32.totalorder %s26, 0
      %p74 = por %p72, %p73
      %p75 = scmp.ne.s32.totalorder %s61, %s62
      %p76 = scmp.eq.s32.totalorder %s27, 7
      %p77 = por %p75, %p76
      %p79 = scmp.ne.s32.totalorder %s62, %s78
      %p80 = scmp.eq.s32.totalorder %s27, 0
      %p81 = por %p79, %p80
      %s82 = ssub.s32 %s28, %s47
      %s83 = ssub.s32 %s30, %s39
      %s84 = sor.u32 %s82, %s83
      %p85 = scmp.eq.s32.totalorder %s84, 0
      %s87 = sadd.s32 %s86, 1
      %s88 = scalar_select %p85, %s86, %s87
      %p91 = pneg %p85
      %p92 = scmp.eq.s32.totalorder %s21, 7
      %p93 = por %p91, %p92
      %p94 = scmp.ne.s32.totalorder %s86, %s89
      %p95 = scmp.eq.s32.totalorder %s21, 0
      %p96 = por %p94, %p95
      %p97 = scmp.ne.s32.totalorder %s86, %s89
      %p98 = scmp.eq.s32.totalorder %s26, 7
      %p99 = por %p97, %p98
      %p100 = scmp.ne.s32.totalorder %s89, %s90
      %p101 = scmp.eq.s32.totalorder %s26, 0
      %p102 = por %p100, %p101
      %p103 = scmp.ne.s32.totalorder %s89, %s90
      %p104 = scmp.eq.s32.totalorder %s27, 7
      %p105 = por %p103, %p104
      %p107 = scmp.ne.s32.totalorder %s90, %s106
      %p108 = scmp.eq.s32.totalorder %s27, 0
      %p109 = por %p107, %p108
      %s111 = sadd.s32 %s110, 1
      %p114 = scmp.eq.s32.totalorder %s21, 7
      %p115 = scmp.ne.s32.totalorder %s110, %s112
      %p116 = scmp.eq.s32.totalorder %s21, 0
      %p117 = por %p115, %p116
      %p118 = scmp.ne.s32.totalorder %s110, %s112
      %p119 = scmp.eq.s32.totalorder %s26, 7
      %p120 = por %p118, %p119
      %p121 = scmp.ne.s32.totalorder %s112, %s113
      %p122 = scmp.eq.s32.totalorder %s26, 0
      %p123 = por %p121, %p122
      %p124 = scmp.ne.s32.totalorder %s112, %s113
      %p125 = scmp.eq.s32.totalorder %s27, 7
      %p126 = por %p124, %p125
      %p128 = scmp.ne.s32.totalorder %s113, %s127
      %p129 = scmp.eq.s32.totalorder %s27, 0
      %p130 = por %p128, %p129
      %s132 = sadd.s32 %s131, 1
      %p135 = scmp.eq.s32.totalorder %s21, 7
      %p136 = scmp.ne.s32.totalorder %s131, %s133
      %p137 = scmp.eq.s32.totalorder %s21, 0
      %p138 = por %p136, %p137
      %p139 = scmp.ne.s32.totalorder %s131, %s133
      %p140 = scmp.eq.s32.totalorder %s26, 7
      %p141 = por %p139, %p140
      %p142 = scmp.ne.s32.totalorder %s133, %s134
      %p143 = scmp.eq.s32.totalorder %s26, 0
      %p144 = por %p142, %p143
      %p145 = scmp.ne.s32.totalorder %s133, %s134
      %p146 = scmp.eq.s32.totalorder %s27, 7
      %p147 = por %p145, %p146
      %p149 = scmp.ne.s32.totalorder %s134, %s148
      %p150 = scmp.eq.s32.totalorder %s27, 0
      %p151 = por %p149, %p150
      %s153 = sadd.s32 %s152, 1
      %p156 = scmp.eq.s32.totalorder %s21, 7
      %p157 = scmp.ne.s32.totalorder %s152, %s154
      %p158 = scmp.eq.s32.totalorder %s21, 0
      %p159 = por %p157, %p158
      %p160 = scmp.ne.s32.totalorder %s152, %s154
      %p161 = scmp.eq.s32.totalorder %s26, 7
      %p162 = por %p160, %p161
      %p163 = scmp.ne.s32.totalorder %s154, %s155
      %p164 = scmp.eq.s32.totalorder %s26, 0
      %p165 = por %p163, %p164
      %p166 = scmp.ne.s32.totalorder %s154, %s155
      %p167 = scmp.eq.s32.totalorder %s27, 7
      %p168 = por %p166, %p167
      %p170 = scmp.ne.s32.totalorder %s155, %s169
      %p171 = scmp.eq.s32.totalorder %s27, 0
      %p172 = por %p170, %p171
      %s174 = sadd.s32 %s173, 1
      %p177 = scmp.eq.s32.totalorder %s21, 7
      %p178 = scmp.ne.s32.totalorder %s173, %s175
      %p179 = scmp.eq.s32.totalorder %s21, 0
      %p180 = por %p178, %p179
      %p181 = scmp.ne.s32.totalorder %s173, %s175
      %p182 = scmp.eq.s32.totalorder %s26, 7
      %p183 = por %p181, %p182
      %p184 = scmp.ne.s32.totalorder %s175, %s176
      %p185 = scmp.eq.s32.totalorder %s26, 0
      %p186 = por %p184, %p185
      %p187 = scmp.ne.s32.totalorder %s175, %s176
      %p188 = scmp.eq.s32.totalorder %s27, 7
      %p189 = por %p187, %p188
      %p191 = scmp.ne.s32.totalorder %s176, %s190
      %p192 = scmp.eq.s32.totalorder %s27, 0
      %p193 = por %p191, %p192
      %s194 = smul.u32 %s30, %s29
      %s195 = smul.u32 %s39, %s43
      %s196 = ssub.s32 %s28, %s47
      %s197 = ssub.s32 %s194, %s195
      %s198 = sor.u32 %s196, %s197
      %p199 = scmp.eq.s32.totalorder %s198, 0
      %s201 = sadd.s32 %s200, 1
      %s202 = scalar_select %p199, %s200, %s201
      %p205 = pneg %p199
      %p206 = scmp.eq.s32.totalorder %s21, 7
      %p207 = por %p205, %p206
      %p208 = scmp.ne.s32.totalorder %s200, %s203
      %p209 = scmp.eq.s32.totalorder %s21, 0
      %p210 = por %p208, %p209
      %p211 = scmp.ne.s32.totalorder %s200, %s203
      %p212 = scmp.eq.s32.totalorder %s26, 7
      %p213 = por %p211, %p212
      %p214 = scmp.ne.s32.totalorder %s203, %s204
      %p215 = scmp.eq.s32.totalorder %s26, 0
      %p216 = por %p214, %p215
      %p217 = scmp.ne.s32.totalorder %s203, %s204
      %p218 = scmp.eq.s32.totalorder %s27, 7
      %p219 = por %p217, %p218
      %p221 = scmp.ne.s32.totalorder %s204, %s220
      %p222 = scmp.eq.s32.totalorder %s27, 0
      %p223 = por %p221, %p222
      %p224 = scmp.le.s32.totalorder 1, %s21
      %p225 = scmp.lt.s32.totalorder %s21, 9
      %p226 = pnand %p224, %p225
      %p227 = pneg %p226
      // Predicated region
      $region9: #{tpu_custom_call.1} parent=5 // pred_check
        _
      $region10: #{tpu_custom_call.1} parent=5 // pred_check_branch
        %229 = sbr.rel (%p226) target = $region12
      $region11: #{tpu_custom_call.1} parent=5 // pred_region
        %s230 = ssub.s32 %s21, 1
        // Predicated region
        $region13: #{tpu_custom_call.1} parent=11 // pred_check
          %p231 = pneg %p123
        $region14: #{tpu_custom_call.1} parent=11 // pred_check_branch
          %233 = sbr.rel (%p231) target = $region16
        $region15: #{tpu_custom_call.1} parent=11 // pred_region
          _
        $region16: #{tpu_custom_call.1} parent=11 // pred_fallthru
          _
        // Predicated region
        $region17: #{tpu_custom_call.1} parent=11 // pred_check
          %p234 = pneg %p144
        $region18: #{tpu_custom_call.1} parent=11 // pred_check_branch
          %236 = sbr.rel (%p234) target = $region20
        $region19: #{tpu_custom_call.1} parent=11 // pred_region
          _
        $region20: #{tpu_custom_call.1} parent=11 // pred_fallthru
          _
        // Predicated region
        $region21: #{tpu_custom_call.1} parent=11 // pred_check
          %p237 = pneg %p165
        $region22: #{tpu_custom_call.1} parent=11 // pred_check_branch
          %239 = sbr.rel (%p237) target = $region24
        $region23: #{tpu_custom_call.1} parent=11 // pred_region
          _
        $region24: #{tpu_custom_call.1} parent=11 // pred_fallthru
          _
        // Predicated region
        $region25: #{tpu_custom_call.1} parent=11 // pred_check
          %p240 = pneg %p186
        $region26: #{tpu_custom_call.1} parent=11 // pred_check_branch
          %242 = sbr.rel (%p240) target = $region28
        $region27: #{tpu_custom_call.1} parent=11 // pred_region
          _
        $region28: #{tpu_custom_call.1} parent=11 // pred_fallthru
          _
      $region12: #{tpu_custom_call.1} parent=5 // pred_fallthru
        _
      %p243 = scmp.lt.s32.totalorder %s21, 8
      // Predicated region
      $region29: #{tpu_custom_call.1} parent=5 // pred_check
        %p244 = pneg %p243
      $region30: #{tpu_custom_call.1} parent=5 // pred_check_branch
        %246 = sbr.rel (%p244) target = $region32
      $region31: #{tpu_custom_call.1} parent=5 // pred_region
        // Predicated region
        $region33: #{tpu_custom_call.1} parent=31 // pred_check
          %p247 = pneg %p68
        $region34: #{tpu_custom_call.1} parent=31 // pred_check_branch
          %249 = sbr.rel (%p247) target = $region36
        $region35: #{tpu_custom_call.1} parent=31 // pred_region
          %s250 = sand.u32 %s58, 1
          %s251 = scalar_lea.sflag [#allocation5], %s250
          %s252 = sand.u32 %s58, 1
          %s253 = smul.addr %s252, 16
          %s254 = scalar_lea.vmem [#allocation4], %s253
          %s255 = ssub.s32 1, %s29
          %s256 = smul.u32 %s30, %s255
          %s257 = sadd.s32 %s256, %s29
          %s259 = ssub.s32 256, 256
          %260 = vsyncadd %s251, %s259
          %s261 = smul.addr %s28, 4
          %s262 = sadd.s32 %s257, %s261
          %s263 = smul.addr %s262, 128
          %s264 = scalar_lea.hbm %s0, %s263
          %s265 = sshll.u32 %s254, 4
          %s266 = int_to_ptr.vmem [resolvable:$true] %s265
          %271 = dma.hbm_to_vmem [thread:$0]  %s264, 256, %s266, %s251, 256, 128, 8
        $region36: #{tpu_custom_call.1} parent=31 // pred_fallthru
          _
        // Predicated region
        $region37: #{tpu_custom_call.1} parent=31 // pred_check
          %p272 = pneg %p96
        $region38: #{tpu_custom_call.1} parent=31 // pred_check_branch
          %274 = sbr.rel (%p272) target = $region40
        $region39: #{tpu_custom_call.1} parent=31 // pred_region
          %s275 = sand.u32 %s86, 1
          %s276 = scalar_lea.sflag [#allocation8], %s275
          %s277 = sand.u32 %s86, 1
          %s278 = smul.addr %s277, 8
          %s279 = scalar_lea.vmem [#allocation7], %s278
          %s281 = ssub.s32 128, 128
          %282 = vsyncadd %s276, %s281
          %s283 = smul.addr %s28, 2
          %s284 = sadd.s32 %s30, %s283
          %s285 = smul.addr %s284, 128
          %s286 = scalar_lea.hbm %s1, %s285
          %s288 = sshll.u32 %s279, 4
          %s289 = int_to_ptr.vmem [resolvable:$true] %s288
          %291 = dma.hbm_to_vmem [thread:$0]  %s286, 128, %s289, %s276
        $region40: #{tpu_custom_call.1} parent=31 // pred_fallthru
          _
      $region32: #{tpu_custom_call.1} parent=5 // pred_fallthru
        _
      %p292 = scmp.le.s32.totalorder 1, %s21
      %p293 = scmp.lt.s32.totalorder %s21, 9
      %p294 = pnand %p292, %p293
      %p295 = pneg %p294
      // Predicated region
      $region41: #{tpu_custom_call.1} parent=5 // pred_check
        _
      $region42: #{tpu_custom_call.1} parent=5 // pred_check_branch
        %297 = sbr.rel (%p294) target = $region44
      $region43: #{tpu_custom_call.1} parent=5 // pred_region
        %s298 = ssub.s32 %s21, 1
        %s299 = sand.u32 %s61, 1
        %s300 = scalar_lea.sflag [#allocation5], %s299
        %s301 = sand.u32 %s61, 1
        %s302 = smul.addr %s301, 16
        %s303 = scalar_lea.vmem [#allocation4], %s302
        // Predicated region
        $region45: #{tpu_custom_call.1} parent=43 // pred_check
          %p304 = pneg %p74
        $region46: #{tpu_custom_call.1} parent=43 // pred_check_branch
          %306 = sbr.rel (%p304) target = $region48
        $region47: #{tpu_custom_call.1} parent=43 // pred_region
          %307 = dma.done %s300, 256
        $region48: #{tpu_custom_call.1} parent=43 // pred_fallthru
          _
        %s308 = sand.u32 %s89, 1
        %s309 = scalar_lea.sflag [#allocation8], %s308
        %s310 = sand.u32 %s89, 1
        %s311 = smul.addr %s310, 8
        %s312 = scalar_lea.vmem [#allocation7], %s311
        // Predicated region
        $region49: #{tpu_custom_call.1} parent=43 // pred_check
          %p313 = pneg %p102
        $region50: #{tpu_custom_call.1} parent=43 // pred_check_branch
          %315 = sbr.rel (%p313) target = $region52
        $region51: #{tpu_custom_call.1} parent=43 // pred_region
          %316 = dma.done %s309, 128
        $region52: #{tpu_custom_call.1} parent=43 // pred_fallthru
          _
        %s317 = sand.u32 %s61, 1
        %s318 = scalar_lea.sflag [#allocation5], %s317
        %s319 = sand.u32 %s61, 1
        %s320 = smul.addr %s319, 16
        %s321 = scalar_lea.vmem [#allocation4], %s320
        %p322 = pneg %p74
        %p323 = pneg %p71
        %s324 = sand.u32 %s89, 1
        %s325 = scalar_lea.sflag [#allocation8], %s324
        %s326 = sand.u32 %s89, 1
        %s327 = smul.addr %s326, 8
        %s328 = scalar_lea.vmem [#allocation7], %s327
        %p329 = pneg %p102
        %p330 = pneg %p99
        %p331 = pneg %p123
        %p332 = pneg %p120
        %p333 = pneg %p144
        %p334 = pneg %p141
        %p335 = pneg %p165
        %p336 = pneg %p162
        %p337 = pneg %p186
        %p338 = pneg %p183
        %p339 = pneg %p216
        %p340 = pneg %p213
        %s341 = sand.u32 %s203, 1
        %s342 = scalar_lea.sflag [#allocation6], %s341
        %s343 = sand.u32 %s203, 1
        %s344 = smul.addr %s343, 8
        %s345 = scalar_lea.vmem [#allocation9], %s344
        %s346 = ssub.s32 1, %s32
        %s347 = smul.u32 %s33, %s346
        %s348 = sadd.s32 %s347, %s32
        %s349 = smul.u32 %s33, %s32
        %p351 = scmp.eq.s32.totalorder %s32, 0
        // Predicated region
        $region53: #{tpu_custom_call.1} parent=43 // pred_check
          %p352 = pneg %p351
        $region54: #{tpu_custom_call.1} parent=43 // pred_check_branch
          %354 = sbr.rel (%p352) target = $region56
        $region55: #{tpu_custom_call.1} parent=43 // pred_region
          %v355 = vld [vmem:[%s303] sm:$0xff]
          %v356 = vld [vmem:[%s303 + $0x8] sm:$0xff]
          %v357 = vld [vmem:[%s312] sm:$0xff]
          %v358 = vld [vmem:[%s2] sm:$0xf]
          %v359 = vpack.c.bf16 %v356, %v355
          %v360 = vld [vmem:[%s3] sm:$0xff]
          %362 = vset.pattern.permute.xlu0 0
          %363 = vperm.xlu0 %362, %v360
          %v364 = vpop.permute.xlu0 %363
          %vm366 = vcmask 130048
          %v368 = vsel %vm366, %v358, 0
          %370 = vmatprep.subr.bf16.mxu0 0
          %371 = vmatpush1.bf16.msra.mxu0 %v359
          %372 = vmatprep.subr.bf16.mxu0 0
          %373 = vmatpush1.bf16.msra.mxu0 0
          %374 = vmatprep.subr.bf16.mxu0 0
          %375 = vmatpush1.bf16.msra.mxu0 0
          %376 = vmatprep.subr.bf16.mxu0 0
          %377 = vmatpush1.bf16.msra.mxu0 0
          %378 = vmatprep.subr.bf16.mxu0 0
          %379 = vmatpush1.bf16.msra.mxu0 0
          %380 = vmatprep.subr.bf16.mxu0 0
          %381 = vmatpush1.bf16.msra.mxu0 0
          %382 = vmatprep.subr.bf16.mxu0 0
          %383 = vmatpush1.bf16.msra.mxu0 0
          %384 = vmatprep.subr.bf16.mxu0 0
          %385 = vmatpush1.bf16.msra.mxu0 0
          %386 = vmatprep.subr.bf16.mxu0 0
          %387 = vmatpush1.bf16.msra.mxu0 0
          %388 = vmatprep.subr.bf16.mxu0 0
          %389 = vmatpush1.bf16.msra.mxu0 0
          %390 = vmatprep.subr.bf16.mxu0 0
          %391 = vmatpush1.bf16.msra.mxu0 0
          %392 = vmatprep.subr.bf16.mxu0 0
          %393 = vmatpush1.bf16.msra.mxu0 0
          %394 = vmatprep.subr.bf16.mxu0 0
          %395 = vmatpush1.bf16.msra.mxu0 0
          %396 = vmatprep.subr.bf16.mxu0 0
          %397 = vmatpush1.bf16.msra.mxu0 0
          %398 = vmatprep.subr.bf16.mxu0 0
          %399 = vmatpush1.bf16.msra.mxu0 0
          %400 = vmatprep.subr.bf16.mxu0 0
          %401 = vmatpush1.bf16.msra.mxu0 0
          %402 = vmatprep.mubr.bf16.mxu0 0
          %403 = vmatmul.mubr.bf16.gmra.mrb[0].mxu0 %v368
          %v404 = vpop.f32.mrb[0].mxu0
          %v405 = vadd.f32 %v364, %v404
          %v406 = vpop.f32.mrb[0].mxu0
          %v407 = vpop.f32.mrb[0].mxu0
          %v408 = vpop.f32.mrb[0].mxu0
          %409 = vdwg.mxu0
          %v410 = vmax.f32 %v405, 0.0
          %v411 = vpack.c.bf16 %v410, %v410
          %v412 = vpack.c.bf16 %v357, %v357
          %413 = vmatprep.subr.bf16.mxu0 0
          %414 = vmatpush1.bf16.xpose.msra.mxu0 %v411
          %415 = vmatprep.subr.bf16.mxu0 0
          %416 = vmatpush1.bf16.xpose.msra.mxu0 0
          %417 = vmatprep.subr.bf16.mxu0 0
          %418 = vmatpush1.bf16.xpose.msra.mxu0 0
          %419 = vmatprep.subr.bf16.mxu0 0
          %420 = vmatpush1.bf16.xpose.msra.mxu0 0
          %421 = vmatprep.subr.bf16.mxu0 0
          %422 = vmatpush1.bf16.xpose.msra.mxu0 0
          %423 = vmatprep.subr.bf16.mxu0 0
          %424 = vmatpush1.bf16.xpose.msra.mxu0 0
          %425 = vmatprep.subr.bf16.mxu0 0
          %426 = vmatpush1.bf16.xpose.msra.mxu0 0
          %427 = vmatprep.subr.bf16.mxu0 0
          %428 = vmatpush1.bf16.xpose.msra.mxu0 0
          %429 = vmatprep.subr.bf16.mxu0 0
          %430 = vmatpush1.bf16.xpose.msra.mxu0 0
          %431 = vmatprep.subr.bf16.mxu0 0
          %432 = vmatpush1.bf16.xpose.msra.mxu0 0
          %433 = vmatprep.subr.bf16.mxu0 0
          %434 = vmatpush1.bf16.xpose.msra.mxu0 0
          %435 = vmatprep.subr.bf16.mxu0 0
          %436 = vmatpush1.bf16.xpose.msra.mxu0 0
          %437 = vmatprep.subr.bf16.mxu0 0
          %438 = vmatpush1.bf16.xpose.msra.mxu0 0
          %439 = vmatprep.subr.bf16.mxu0 0
          %440 = vmatpush1.bf16.xpose.msra.mxu0 0
          %441 = vmatprep.subr.bf16.mxu0 0
          %442 = vmatpush1.bf16.xpose.msra.mxu0 0
          %443 = vmatprep.subr.bf16.mxu0 0
          %444 = vmatpush1.bf16.xpose.msra.mxu0 0
          %445 = vmatprep.mubr.bf16.mxu0 0
          %446 = vmatmul.mubr.bf16.gmra.mrb[0].mxu0 %v412
          %v447 = vpop.f32.mrb[0].mxu0
          %v448 = vadd.f32 0.0, %v447
          %v449 = vpop.f32.mrb[0].mxu0
          %v450 = vpop.f32.mrb[0].mxu0
          %v451 = vpop.f32.mrb[0].mxu0
          %452 = vdwg.mxu0
          %p453 = scmp.eq.s32.totalorder %s33, 0
          // Predicated region
          $region57: #{tpu_custom_call.1} parent=55 // pred_check
            %p454 = pneg %p453
          $region58: #{tpu_custom_call.1} parent=55 // pred_check_branch
            %456 = sbr.rel (%p454) target = $region60
          $region59: #{tpu_custom_call.1} parent=55 // pred_region
            %vm457 = vcmask 64512
            %458 = vst.msk [vmem:[#allocation2] sm:$0xff] %vm457, %v448
          $region60: #{tpu_custom_call.1} parent=55 // pred_fallthru
            _
          %p459 = scmp.gt.s32.totalorder %s33, 0
          // Predicated region
          $region61: #{tpu_custom_call.1} parent=55 // pred_check
            %p460 = pneg %p459
          $region62: #{tpu_custom_call.1} parent=55 // pred_check_branch
            %462 = sbr.rel (%p460) target = $region64
          $region63: #{tpu_custom_call.1} parent=55 // pred_region
            %v463 = vld [vmem:[#allocation2] sm:$0xff]
            %v464 = vadd.f32 %v463, %v448
            %vm465 = vcmask 64512
            %466 = vst.msk [vmem:[#allocation2] sm:$0xff] %vm465, %v464
          $region64: #{tpu_custom_call.1} parent=55 // pred_fallthru
            _
        $region56: #{tpu_custom_call.1} parent=43 // pred_fallthru
          _
        %p467 = scmp.eq.s32.totalorder %s32, 1
        // Predicated region
        $region65: #{tpu_custom_call.1} parent=43 // pred_check
          %p468 = pneg %p467
        $region66: #{tpu_custom_call.1} parent=43 // pred_check_branch
          %470 = sbr.rel (%p468) target = $region68
        $region67: #{tpu_custom_call.1} parent=43 // pred_region
          %p471 = scmp.eq.s32.totalorder %s33, 0
          // Predicated region
          $region69: #{tpu_custom_call.1} parent=67 // pred_check
            %p472 = pneg %p471
          $region70: #{tpu_custom_call.1} parent=67 // pred_check_branch
            %474 = sbr.rel (%p472) target = $region72
          $region71: #{tpu_custom_call.1} parent=67 // pred_region
            %v475 = vld [vmem:[#allocation2] sm:$0xff]
            %vm476 = vcmask 64512
            %v477 = vsel %vm476, %v475, inf
            %478 = vmin.xlane.f32.xlu0 %v477
            %v479 = vpop.xlane.xlu0 %478
            %v480 = vsub.f32 %v479, %v475
            %v481 = vmul.f32 %v480, 1.442695
            %v482 = vpow.pop %v481
            %v483 = vsel %vm476, %v482, 0.0
            %484 = vadd.xlane.f32.xlu0 %v483
            %v485 = vpop.xlane.xlu0 %484
            %v486 = vrcp.pop %v485
            %v487 = vmul.f32 %v482, %v486
            %v488 = vld [vmem:[%s4] sm:$0xf]
            %v489 = vpack.c.bf16 %v487, %v487
            %v491 = vsel %vm476, %v488, 0
            %v494 = vsel %vm476, %v489, 0
            %496 = vmatprep.subr.bf16.mxu0 0
            %497 = vmatpush1.bf16.xpose.msra.mxu0 %v494
            %498 = vmatprep.subr.bf16.mxu0 0
            %499 = vmatpush1.bf16.xpose.msra.mxu0 0
            %500 = vmatprep.subr.bf16.mxu0 0
            %501 = vmatpush1.bf16.xpose.msra.mxu0 0
            %502 = vmatprep.subr.bf16.mxu0 0
            %503 = vmatpush1.bf16.xpose.msra.mxu0 0
            %504 = vmatprep.subr.bf16.mxu0 0
            %505 = vmatpush1.bf16.xpose.msra.mxu0 0
            %506 = vmatprep.subr.bf16.mxu0 0
            %507 = vmatpush1.bf16.xpose.msra.mxu0 0
            %508 = vmatprep.subr.bf16.mxu0 0
            %509 = vmatpush1.bf16.xpose.msra.mxu0 0
            %510 = vmatprep.subr.bf16.mxu0 0
            %511 = vmatpush1.bf16.xpose.msra.mxu0 0
            %512 = vmatprep.subr.bf16.mxu0 0
            %513 = vmatpush1.bf16.xpose.msra.mxu0 0
            %514 = vmatprep.subr.bf16.mxu0 0
            %515 = vmatpush1.bf16.xpose.msra.mxu0 0
            %516 = vmatprep.subr.bf16.mxu0 0
            %517 = vmatpush1.bf16.xpose.msra.mxu0 0
            %518 = vmatprep.subr.bf16.mxu0 0
            %519 = vmatpush1.bf16.xpose.msra.mxu0 0
            %520 = vmatprep.subr.bf16.mxu0 0
            %521 = vmatpush1.bf16.xpose.msra.mxu0 0
            %522 = vmatprep.subr.bf16.mxu0 0
            %523 = vmatpush1.bf16.xpose.msra.mxu0 0
            %524 = vmatprep.subr.bf16.mxu0 0
            %525 = vmatpush1.bf16.xpose.msra.mxu0 0
            %526 = vmatprep.subr.bf16.mxu0 0
            %527 = vmatpush1.bf16.xpose.msra.mxu0 0
            %528 = vmatprep.mubr.bf16.mxu0 0
            %529 = vmatmul.mubr.bf16.gmra.mrb[0].mxu0 %v491
            %v530 = vpop.f32.mrb[0].mxu0
            %v531 = vadd.f32 0.0, %v530
            %v532 = vpop.f32.mrb[0].mxu0
            %v533 = vpop.f32.mrb[0].mxu0
            %v534 = vpop.f32.mrb[0].mxu0
            %535 = vdwg.mxu0
            %v536 = vpack.c.bf16 %v531, %v531
            %vm537 = vcmask 60416
            %538 = vst.msk [vmem:[#allocation3] sm:$0xf] %vm537, %v536
          $region72: #{tpu_custom_call.1} parent=67 // pred_fallthru
            _
          %v539 = vld [vmem:[#allocation3] sm:$0xf]
          %v540 = vld [vmem:[%s312] sm:$0xff]
          %v541 = vpack.c.bf16 %v540, %v540
          %v542 = vld [vmem:[%s5] sm:$0xff]
          %544 = vset.pattern.permute.xlu0 0
          %545 = vperm.xlu0 %544, %v542
          %v546 = vpop.permute.xlu0 %545
          %vm548 = vcmask 64512
          %v550 = vsel %vm548, %v539, 0
          %vm552 = vcmask 1043456
          %v554 = vsel %vm552, %v541, 0
          %556 = vmatprep.subr.bf16.mxu0 0
          %557 = vmatpush1.bf16.msra.mxu0 %v554
          %558 = vmatprep.subr.bf16.mxu0 0
          %559 = vmatpush1.bf16.msra.mxu0 0
          %560 = vmatprep.subr.bf16.mxu0 0
          %561 = vmatpush1.bf16.msra.mxu0 0
          %562 = vmatprep.subr.bf16.mxu0 0
          %563 = vmatpush1.bf16.msra.mxu0 0
          %564 = vmatprep.subr.bf16.mxu0 0
          %565 = vmatpush1.bf16.msra.mxu0 0
          %566 = vmatprep.subr.bf16.mxu0 0
          %567 = vmatpush1.bf16.msra.mxu0 0
          %568 = vmatprep.subr.bf16.mxu0 0
          %569 = vmatpush1.bf16.msra.mxu0 0
          %570 = vmatprep.subr.bf16.mxu0 0
          %571 = vmatpush1.bf16.msra.mxu0 0
          %572 = vmatprep.subr.bf16.mxu0 0
          %573 = vmatpush1.bf16.msra.mxu0 0
          %574 = vmatprep.subr.bf16.mxu0 0
          %575 = vmatpush1.bf16.msra.mxu0 0
          %576 = vmatprep.subr.bf16.mxu0 0
          %577 = vmatpush1.bf16.msra.mxu0 0
          %578 = vmatprep.subr.bf16.mxu0 0
          %579 = vmatpush1.bf16.msra.mxu0 0
          %580 = vmatprep.subr.bf16.mxu0 0
          %581 = vmatpush1.bf16.msra.mxu0 0
          %582 = vmatprep.subr.bf16.mxu0 0
          %583 = vmatpush1.bf16.msra.mxu0 0
          %584 = vmatprep.subr.bf16.mxu0 0
          %585 = vmatpush1.bf16.msra.mxu0 0
          %586 = vmatprep.subr.bf16.mxu0 0
          %587 = vmatpush1.bf16.msra.mxu0 0
          %588 = vmatprep.mubr.bf16.mxu0 0
          %589 = vmatmul.mubr.bf16.gmra.mrb[0].mxu0 %v550
          %v590 = vpop.f32.mrb[0].mxu0
          %v591 = vadd.f32 %v546, %v590
          %v592 = vpop.f32.mrb[0].mxu0
          %v593 = vpop.f32.mrb[0].mxu0
          %v594 = vpop.f32.mrb[0].mxu0
          %595 = vdwg.mxu0
          %596 = vst [vmem:[%s345] sm:$0xff] %v591
        $region68: #{tpu_custom_call.1} parent=43 // pred_fallthru
          _
        %s597 = sand.u32 %s203, 1
        %s598 = scalar_lea.sflag [#allocation6], %s597
        %s599 = sand.u32 %s203, 1
        %s600 = smul.addr %s599, 8
        %s601 = scalar_lea.vmem [#allocation9], %s600
        // Predicated region
        $region73: #{tpu_custom_call.1} parent=43 // pred_check
          %p602 = pneg %p213
        $region74: #{tpu_custom_call.1} parent=43 // pred_check_branch
          %604 = sbr.rel (%p602) target = $region76
        $region75: #{tpu_custom_call.1} parent=43 // pred_region
          %s605 = smul.u32 %s33, %s32
          %s607 = ssub.s32 128, 128
          %608 = vsyncadd %s598, %s607
          %s609 = smul.addr %s31, 2
          %s610 = sadd.s32 %s605, %s609
          %s611 = smul.addr %s610, 128
          %s612 = scalar_lea.hbm %s6, %s611
          %s614 = sshll.u32 %s601, 4
          %s615 = int_to_ptr.vmem [resolvable:$true] %s614
          %617 = dma.vmem_to_hbm [thread:$0]  %s615, 128, %s612, %s598
        $region76: #{tpu_custom_call.1} parent=43 // pred_fallthru
          _
      $region44: #{tpu_custom_call.1} parent=5 // pred_fallthru
        _
      %p618 = scmp.le.s32.totalorder 2, %s21
      // Predicated region
      $region77: #{tpu_custom_call.1} parent=5 // pred_check
        %p619 = pneg %p618
      $region78: #{tpu_custom_call.1} parent=5 // pred_check_branch
        %621 = sbr.rel (%p619) target = $region80
      $region79: #{tpu_custom_call.1} parent=5 // pred_region
        %s622 = ssub.s32 %s21, 2
        // Predicated region
        $region81: #{tpu_custom_call.1} parent=79 // pred_check
          %p623 = pneg %p219
        $region82: #{tpu_custom_call.1} parent=79 // pred_check_branch
          %625 = sbr.rel (%p623) target = $region84
        $region83: #{tpu_custom_call.1} parent=79 // pred_region
          %s626 = sand.u32 %s204, 1
          %s627 = scalar_lea.sflag [#allocation6], %s626
          %s628 = sand.u32 %s204, 1
          %s629 = smul.addr %s628, 8
          %s630 = scalar_lea.vmem [#allocation9], %s629
          %631 = dma.done %s627, 128
        $region84: #{tpu_custom_call.1} parent=79 // pred_fallthru
          _
      $region80: #{tpu_custom_call.1} parent=5 // pred_fallthru
        _
    $region6: #{tpu_custom_call.1} parent=1 // loop_footer
      %s25 = sadd.s32 1, %s21
    $region7: #{tpu_custom_call.1} parent=1 // loop_footer_branch
      %20 = sbr.rel target = $region3
    $region8: #{tpu_custom_call.1} parent=1 // loop_exit
      _
    %632 = vsyncpa [#allocation5], 1
    %s633 = scalar_lea.sflag [#allocation5], 1
    %634 = vsyncpa %s633, 1
    %635 = vsyncpa [#allocation8], 1
    %s636 = scalar_lea.sflag [#allocation8], 1
    %637 = vsyncpa %s636, 1
    %638 = vsyncpa [#allocation6], 1
    %s639 = scalar_lea.sflag [#allocation6], 1
    %640 = vsyncpa %s639, 1

</llo_original>
